<compile_context>
chip_gen: v6e
topology: v6e:2x2x1
jax: 0.10.0
libtpu: 0.0.40
codegen_flags: <defaults>
</compile_context>

<pallas_src>
import jax
import jax.numpy as jnp
from jax import lax
from jax.experimental import pallas as pl
from jax.experimental.pallas import tpu as pltpu

N_LAYERS = 3  # eval(args.layer_size) has 3 entries


def _round_up(x, m):
    return ((x + m - 1) // m) * m


def _pad_and_tile(n, max_tile, align=128):
    """Pick a tile in {128, 256, ..., max_tile} and pad n to a multiple of it.

    Padding is always to a multiple of the chosen tile, so the block size can
    never silently collapse below the intended size.
    """
    tile = align
    while tile < max_tile and n > tile:
        tile *= 2
    return _round_up(n, tile), tile


def _vmem_limit_bytes():
    # Size against physical VMEM (v5e/v6e: 128 MiB, v7x: 64 MiB) with headroom.
    try:
        cap = pltpu.get_tpu_info().vmem_capacity_bytes
        return int(min(100 * 1024 * 1024, (cap * 3) // 4))
    except Exception:  # conservative fallback, safe on all generations
        return 48 * 1024 * 1024


# ---------------------------------------------------------------------------
# Kernel 1: fused bipartite LightGCN layer — reads R once, produces
#   U_out = R @ I_in   and   I_out = R^T @ U_in   (bf16 out, f32 accumulation)
# ---------------------------------------------------------------------------
def lightgcn_layer(R_p, u_in, i_in, *, tm, tk):
    nu_p, ni_p = R_p.shape
    d_p = u_in.shape[1]
    n_row = nu_p // tm
    n_col = ni_p // tk

    def kernel(r_ref, i_in_ref, u_in_ref, u_out_ref, i_out_ref,
               u_acc_ref, i_acc_ref):
        ri = pl.program_id(0)          # user row-tile (outer)
        ki = pl.program_id(1)          # item col-tile (inner; reduction for U)
        nri = pl.num_programs(0)
        nki = pl.num_programs(1)

        @pl.when(ki == 0)
        def _():
            u_acc_ref[...] = jnp.zeros_like(u_acc_ref)

        @pl.when((ri == 0) & (ki == 0))
        def _():
            i_acc_ref[...] = jnp.zeros_like(i_acc_ref)

        r = r_ref[...]                                    # (tm, tk) bf16
        off = pl.multiple_of(ki * tk, tk)

        # user side: U'[ri] += R[ri, ki] @ I[ki]   (I is VMEM-resident)
        u_acc_ref[...] += jnp.dot(
            r, i_in_ref[pl.ds(off, tk), :],
            preferred_element_type=jnp.float32)

        # item side: I'[ki] += R[ri, ki]^T @ U[ri]  (contract sublane dim of R)
        contrib = lax.dot_general(
            r, u_in_ref[...], (((0,), (0,)), ((), ())),
            preferred_element_type=jnp.float32)
        i_acc_ref[pl.ds(off, tk), :] = i_acc_ref[pl.ds(off, tk), :] + contrib

        @pl.when(ki == nki - 1)
        def _():
            u_out_ref[...] = u_acc_ref[...].astype(u_out_ref.dtype)

        @pl.when((ri == nri - 1) & (ki == nki - 1))
        def _():
            i_out_ref[...] = i_acc_ref[...].astype(i_out_ref.dtype)

    return pl.pallas_call(
        kernel,
        out_shape=(jax.ShapeDtypeStruct((nu_p, d_p), jnp.bfloat16),
                   jax.ShapeDtypeStruct((ni_p, d_p), jnp.bfloat16)),
        grid_spec=pltpu.PrefetchScalarGridSpec(
            num_scalar_prefetch=0,
            grid=(n_row, n_col),
            in_specs=[
                pl.BlockSpec((tm, tk), lambda ri, ki: (ri, ki)),    # R tile
                pl.BlockSpec((ni_p, d_p), lambda ri, ki: (0, 0)),   # I resident
                pl.BlockSpec((tm, d_p), lambda ri, ki: (ri, 0)),    # U row block
            ],
            out_specs=[
                pl.BlockSpec((tm, d_p), lambda ri, ki: (ri, 0)),    # U'
                pl.BlockSpec((ni_p, d_p), lambda ri, ki: (0, 0)),   # I' resident
            ],
            scratch_shapes=[
                pltpu.VMEM((tm, d_p), jnp.float32),     # user-side accumulator
                pltpu.VMEM((ni_p, d_p), jnp.float32),   # item-side accumulator
            ],
        ),
        compiler_params=pltpu.CompilerParams(
            # Item accumulator is carried across BOTH grid axes -> sequential.
            dimension_semantics=("arbitrary", "arbitrary"),
            vmem_limit_bytes=_vmem_limit_bytes(),
        ),
    )(R_p, i_in, u_in)


# ---------------------------------------------------------------------------
# Kernel 2: rating = sigmoid(U @ It)   (It already transposed to (D, Bi))
# ---------------------------------------------------------------------------
def _rating_kernel(u_ref, it_ref, o_ref):
    logits = jnp.dot(u_ref[...], it_ref[...], preferred_element_type=jnp.float32)
    o_ref[...] = jax.nn.sigmoid(logits)


def rating(U, It, *, tm, tn):
    Bu, D = U.shape
    _, Bi = It.shape
    grid = (Bu // tm, Bi // tn)
    return pl.pallas_call(
        _rating_kernel,
        out_shape=jax.ShapeDtypeStruct((Bu, Bi), jnp.float32),
        grid_spec=pltpu.PrefetchScalarGridSpec(
            num_scalar_prefetch=0,
            grid=grid,
            in_specs=[
                pl.BlockSpec((tm, D), lambda i, j: (i, 0)),
                pl.BlockSpec((D, tn), lambda i, j: (0, j)),
            ],
            out_specs=pl.BlockSpec((tm, tn), lambda i, j: (i, j)),
        ),
        compiler_params=pltpu.CompilerParams(
            dimension_semantics=("parallel", "parallel"),
            vmem_limit_bytes=_vmem_limit_bytes(),
        ),
    )(U, It)


# ---------------------------------------------------------------------------
# ALGN forward wrapper (matches ALGN.forward: computer() -> gather -> sigmoid)
# ---------------------------------------------------------------------------
def algn_forward(R_norm, user_emb, item_emb, users, items, n_layers=N_LAYERS):
    n_user, D = user_emb.shape
    n_item = item_emb.shape[0]

    d_p = _round_up(D, 128)                  # lane-dense embedding dim
    nu_p, tm = _pad_and_tile(n_user, 512)    # pad to multiple of tile (<=512)
    ni_p, tk = _pad_and_tile(n_item, 512)

    R_p = (jnp.zeros((nu_p, ni_p), jnp.bfloat16)
           .at[:n_user, :n_item].set(R_norm.astype(jnp.bfloat16)))

    Eu = jnp.zeros((nu_p, d_p), jnp.float32).at[:n_user, :D].set(user_emb)
    Ei = jnp.zeros((ni_p, d_p), jnp.float32).at[:n_item, :D].set(item_emb)

    u_cur = Eu.astype(jnp.bfloat16)
    i_cur = Ei.astype(jnp.bfloat16)
    u_layers = [Eu]
    i_layers = [Ei]
    for _ in range(n_layers):
        u_next, i_next = lightgcn_layer(R_p, u_cur, i_cur, tm=tm, tk=tk)
        u_layers.append(u_next)
        i_layers.append(i_next)
        u_cur, i_cur = u_next, i_next

    # One fused elementwise pass per side (XLA fuses the chained adds, f32).
    u_sum = u_layers[0]
    for t in u_layers[1:]:
        u_sum = u_sum + t.astype(jnp.float32)
    i_sum = i_layers[0]
    for t in i_layers[1:]:
        i_sum = i_sum + t.astype(jnp.float32)

    # Fold the 1/(L+1) mean into the gathered (batch-sized) rows only.
    inv = jnp.float32(1.0 / (n_layers + 1))
    users_emb = u_sum[users] * inv            # (Bu, d_p) f32
    items_emb = i_sum[items] * inv            # (Bi, d_p) f32

    Bu, Bi = users_emb.shape[0], items_emb.shape[0]
    bu_p, tmr = _pad_and_tile(Bu, 256)        # >= 128, sublane/lane dense
    bi_p, tnr = _pad_and_tile(Bi, 512)

    U = (jnp.zeros((bu_p, d_p), jnp.bfloat16)
         .at[:Bu, :].set(users_emb.astype(jnp.bfloat16)))
    It = (jnp.zeros((d_p, bi_p), jnp.bfloat16)
          .at[:, :Bi].set(items_emb.astype(jnp.bfloat16).T))

    gamma_p = rating(U, It, tm=tmr, tn=tnr)   # (bu_p, bi_p) f32, lane-dense
    return gamma_p[:Bu, :Bi]


# ---------------------------------------------------------------------------
# Deterministic setup + run + reference check
# ---------------------------------------------------------------------------
if __name__ == "__main__":
    n_user, n_item, emb_size = 48, 80, 32
    key = jax.random.PRNGKey(0)
    k_r, k_u, k_i = jax.random.split(key, 3)

    # nn.init.normal_(..., std=0.1)
    user_emb = 0.1 * jax.random.normal(k_u, (n_user, emb_size), jnp.float32)
    item_emb = 0.1 * jax.random.normal(k_i, (n_item, emb_size), jnp.float32)

    # Random bipartite interactions R; symmetric normalization of the full
    # adjacency reduces exactly to R_norm = D_u^{-1/2} R D_i^{-1/2}.
    R = (jax.random.uniform(k_r, (n_user, n_item)) < 0.2).astype(jnp.float32)
    du = jnp.sum(R, axis=1)
    di = jnp.sum(R, axis=0)
    du_is = jnp.where(du > 0, 1.0 / jnp.sqrt(du), 0.0)
    di_is = jnp.where(di > 0, 1.0 / jnp.sqrt(di), 0.0)
    R_norm = R * du_is[:, None] * di_is[None, :]

    users = jnp.arange(8, dtype=jnp.int32)   # batch of 8 users
    items = jnp.arange(16, dtype=jnp.int32)  # batch of 16 items

    gamma = algn_forward(R_norm, user_emb, item_emb, users, items)
    gamma = jax.block_until_ready(gamma)

    # pure-JAX f32 dense reference (identical math to the torch module)
    N = n_user + n_item
    A = jnp.zeros((N, N), jnp.float32)
    A = A.at[:n_user, n_user:].set(R_norm)
    A = A.at[n_user:, :n_user].set(R_norm.T)
    all_emb = jnp.concatenate([user_emb, item_emb], axis=0)
    embs = [all_emb]
    cur = all_emb
    for _ in range(N_LAYERS):
        cur = A @ cur
        embs.append(cur)
    light_out = jnp.mean(jnp.stack(embs, axis=1), axis=1)
    ref = jax.nn.sigmoid(light_out[:n_user][users] @ light_out[n_user:][items].T)

    assert gamma.shape == (users.shape[0], items.shape[0])
    # bf16 MXU operands / bf16 layer outputs (f32 accumulation) -> relaxed tol
    err = float(jnp.max(jnp.abs(gamma - ref)))
    assert jnp.allclose(gamma, ref, atol=2e-2, rtol=2e-2), err

    print("KERNEL_OK")
</pallas_src>

<mosaic_0001>
module attributes {stable_mosaic.version = 11 : i64} {
  func.func @kernel(%arg0: i32, %arg1: i32, %arg2: memref<128x128xbf16, #tpu.memory_space<vmem>>, %arg3: memref<128x128xbf16, #tpu.memory_space<vmem>>, %arg4: memref<128x128xbf16, #tpu.memory_space<vmem>>, %arg5: memref<128x128xbf16, #tpu.memory_space<vmem>>, %arg6: memref<128x128xbf16, #tpu.memory_space<vmem>>, %arg7: memref<128x128xf32, #tpu.memory_space<vmem>>, %arg8: memref<128x128xf32, #tpu.memory_space<vmem>>) attributes {dimension_semantics = [#tpu.dimension_semantics<arbitrary>, #tpu.dimension_semantics<arbitrary>], iteration_bounds = array<i64: 1, 1>, scalar_prefetch = 0 : i64, scratch_operands = 2 : i64, tpu.core_type = #tpu.core_type<tc>, window_params = [{transform_indices = @transform_0, window_bounds = array<i64: 128, 128>}, {pipeline_mode = #tpu.pipeline_mode<synchronous>, transform_indices = @transform_1, window_bounds = array<i64: 128, 128>}, {transform_indices = @transform_2, window_bounds = array<i64: 128, 128>}, {transform_indices = @transform_3, window_bounds = array<i64: 128, 128>}, {pipeline_mode = #tpu.pipeline_mode<synchronous>, transform_indices = @transform_4, window_bounds = array<i64: 128, 128>}]} {
    %c0_i32 = arith.constant 0 : i32
    %0 = arith.cmpi eq, %arg1, %c0_i32 : i32
    %1 = arith.extui %0 : i1 to i32
    %c0_i32_0 = arith.constant 0 : i32
    %2 = arith.cmpi ne, %1, %c0_i32_0 : i32
    scf.if %2 {
      %cst_20 = arith.constant 0.000000e+00 : f32
      %32 = vector.broadcast %cst_20 : f32 to vector<128x128xf32>
      %c0_21 = arith.constant 0 : index
      %c0_22 = arith.constant 0 : index
      %33 = vector.load %arg7[%c0_21, %c0_22] : memref<128x128xf32, #tpu.memory_space<vmem>>, vector<128x128xf32>
      tpu.vector_store %arg7[%c0_21, %c0_22], %32 {strides = array<i32>} : memref<128x128xf32, #tpu.memory_space<vmem>>, vector<128x128xf32>,
    } else {
    }
    %c0_i32_1 = arith.constant 0 : i32
    %3 = arith.cmpi eq, %arg0, %c0_i32_1 : i32
    %c0_i32_2 = arith.constant 0 : i32
    %4 = arith.cmpi eq, %arg1, %c0_i32_2 : i32
    %5 = arith.andi %3, %4 : i1
    %6 = arith.extui %5 : i1 to i32
    %c0_i32_3 = arith.constant 0 : i32
    %7 = arith.cmpi ne, %6, %c0_i32_3 : i32
    scf.if %7 {
      %cst_20 = arith.constant 0.000000e+00 : f32
      %32 = vector.broadcast %cst_20 : f32 to vector<128x128xf32>
      %c0_21 = arith.constant 0 : index
      %c0_22 = arith.constant 0 : index
      %33 = vector.load %arg8[%c0_21, %c0_22] : memref<128x128xf32, #tpu.memory_space<vmem>>, vector<128x128xf32>
      tpu.vector_store %arg8[%c0_21, %c0_22], %32 {strides = array<i32>} : memref<128x128xf32, #tpu.memory_space<vmem>>, vector<128x128xf32>,
    } else {
    }
    %c0 = arith.constant 0 : index
    %c0_4 = arith.constant 0 : index
    %8 = vector.load %arg2[%c0, %c0_4] : memref<128x128xbf16, #tpu.memory_space<vmem>>, vector<128x128xbf16>
    %c128_i32 = arith.constant 128 : i32
    %9 = arith.muli %arg1, %c128_i32 : i32
    %10 = tpu.assume_multiple %9, 128 : i32
    %c0_5 = arith.constant 0 : index
    %c0_6 = arith.constant 0 : index
    %11 = vector.load %arg7[%c0_5, %c0_6] : memref<128x128xf32, #tpu.memory_space<vmem>>, vector<128x128xf32>
    %12 = arith.index_cast %10 : i32 to index
    %c0_7 = arith.constant 0 : index
    %13 = vector.load %arg3[%12, %c0_7] : memref<128x128xbf16, #tpu.memory_space<vmem>>, vector<128x128xbf16>
    %cst = arith.constant dense<0.000000e+00> : vector<128x128xf32>
    %14 = tpu.matmul %8, %13, %cst {dimension_numbers = #tpu.dot_dimension_numbers<[1], [0], [0], [1], [0, 0, 1, 1], [], []>} : vector<128x128xbf16>, vector<128x128xbf16>, vector<128x128xf32> -> vector<128x128xf32>
    %15 = arith.addf %11, %14 : vector<128x128xf32>
    %c0_8 = arith.constant 0 : index
    %c0_9 = arith.constant 0 : index
    %16 = vector.load %arg7[%c0_8, %c0_9] : memref<128x128xf32, #tpu.memory_space<vmem>>, vector<128x128xf32>
    tpu.vector_store %arg7[%c0_8, %c0_9], %15 {strides = array<i32>} : memref<128x128xf32, #tpu.memory_space<vmem>>, vector<128x128xf32>,
    %c0_10 = arith.constant 0 : index
    %c0_11 = arith.constant 0 : index
    %17 = vector.load %arg4[%c0_10, %c0_11] : memref<128x128xbf16, #tpu.memory_space<vmem>>, vector<128x128xbf16>
    %cst_12 = arith.constant dense<0.000000e+00> : vector<128x128xf32>
    %18 = tpu.matmul %8, %17, %cst_12 {dimension_numbers = #tpu.dot_dimension_numbers<[0], [0], [1], [1], [0, 1, 1, 1], [], []>} : vector<128x128xbf16>, vector<128x128xbf16>, vector<128x128xf32> -> vector<128x128xf32>
    %19 = arith.index_cast %10 : i32 to index
    %c0_13 = arith.constant 0 : index
    %20 = vector.load %arg8[%19, %c0_13] : memref<128x128xf32, #tpu.memory_space<vmem>>, vector<128x128xf32>
    %21 = arith.addf %20, %18 : vector<128x128xf32>
    %22 = arith.index_cast %10 : i32 to index
    %c0_14 = arith.constant 0 : index
    %23 = vector.load %arg8[%22, %c0_14] : memref<128x128xf32, #tpu.memory_space<vmem>>, vector<128x128xf32>
    tpu.vector_store %arg8[%22, %c0_14], %21 {strides = array<i32>} : memref<128x128xf32, #tpu.memory_space<vmem>>, vector<128x128xf32>,
    %c0_i32_15 = arith.constant 0 : i32
    %24 = arith.cmpi eq, %arg1, %c0_i32_15 : i32
    %25 = arith.extui %24 : i1 to i32
    %c0_i32_16 = arith.constant 0 : i32
    %26 = arith.cmpi ne, %25, %c0_i32_16 : i32
    scf.if %26 {
      %c0_20 = arith.constant 0 : index
      %c0_21 = arith.constant 0 : index
      %32 = vector.load %arg7[%c0_20, %c0_21] : memref<128x128xf32, #tpu.memory_space<vmem>>, vector<128x128xf32>
      %33 = arith.truncf %32 : vector<128x128xf32> to vector<128x128xbf16>
      %c0_22 = arith.constant 0 : index
      %c0_23 = arith.constant 0 : index
      %34 = vector.load %arg5[%c0_22, %c0_23] : memref<128x128xbf16, #tpu.memory_space<vmem>>, vector<128x128xbf16>
      tpu.vector_store %arg5[%c0_22, %c0_23], %33 {strides = array<i32>} : memref<128x128xbf16, #tpu.memory_space<vmem>>, vector<128x128xbf16>,
    } else {
    }
    %c0_i32_17 = arith.constant 0 : i32
    %27 = arith.cmpi eq, %arg0, %c0_i32_17 : i32
    %c0_i32_18 = arith.constant 0 : i32
    %28 = arith.cmpi eq, %arg1, %c0_i32_18 : i32
    %29 = arith.andi %27, %28 : i1
    %30 = arith.extui %29 : i1 to i32
    %c0_i32_19 = arith.constant 0 : i32
    %31 = arith.cmpi ne, %30, %c0_i32_19 : i32
    scf.if %31 {
      %c0_20 = arith.constant 0 : index
      %c0_21 = arith.constant 0 : index
      %32 = vector.load %arg8[%c0_20, %c0_21] : memref<128x128xf32, #tpu.memory_space<vmem>>, vector<128x128xf32>
      %33 = arith.truncf %32 : vector<128x128xf32> to vector<128x128xbf16>
      %c0_22 = arith.constant 0 : index
      %c0_23 = arith.constant 0 : index
      %34 = vector.load %arg6[%c0_22, %c0_23] : memref<128x128xbf16, #tpu.memory_space<vmem>>, vector<128x128xbf16>
      tpu.vector_store %arg6[%c0_22, %c0_23], %33 {strides = array<i32>} : memref<128x128xbf16, #tpu.memory_space<vmem>>, vector<128x128xbf16>,
    } else {
    }
    return
  }
  func.func @transform_0(%arg0: i32, %arg1: i32) -> (i32, i32) {
    %c0_i32 = arith.constant 0 : i32
    return %arg0, %arg1 : i32, i32
  }
  func.func @transform_1(%arg0: i32, %arg1: i32) -> (i32, i32) {
    %c0_i32 = arith.constant 0 : i32
    %c0_i32_0 = arith.constant 0 : i32
    %c0_i32_1 = arith.constant 0 : i32
    return %c0_i32, %c0_i32_0 : i32, i32
  }
  func.func @transform_2(%arg0: i32, %arg1: i32) -> (i32, i32) {
    %c0_i32 = arith.constant 0 : i32
    %c0_i32_0 = arith.constant 0 : i32
    return %arg0, %c0_i32 : i32, i32
  }
  func.func @transform_3(%arg0: i32, %arg1: i32) -> (i32, i32) {
    %c0_i32 = arith.constant 0 : i32
    %c0_i32_0 = arith.constant 0 : i32
    return %arg0, %c0_i32 : i32, i32
  }
  func.func @transform_4(%arg0: i32, %arg1: i32) -> (i32, i32) {
    %c0_i32 = arith.constant 0 : i32
    %c0_i32_0 = arith.constant 0 : i32
    %c0_i32_1 = arith.constant 0 : i32
    return %c0_i32, %c0_i32_0 : i32, i32
  }
}

</mosaic_0001>

<llo_original>
// kernel: tpu_custom_call.1
$region0: #{tpu_custom_call.1}
  #allocation0 [shape = 'u32[]', space=smem, size = 0x4, offset = 0x4, fixed_abs, tag = 'smem constant byte address 0x4 - core index']
  #allocation1 [shape = 'u32[144,128]{1,0:T(1,128)}', space=vmem, size = 0x12000, scoped, tag = 'internal scratch']
  #allocation2 [shape = 'f32[128,128]{1,0:T(8,128)}', space=vmem, size = 0x10000, scoped, tag = 'scratch operand']
  #allocation3 [shape = 'f32[128,128]{1,0:T(8,128)}', space=vmem, size = 0x10000, scoped, tag = 'scratch operand']
  %s0 = inlined_call_operand.hbm [shape: bf16[128,128], index: 0, kind: input, shape index: {}]
  %s1 = inlined_call_operand.hbm [shape: bf16[128,128], index: 1, kind: input, shape index: {}]
  %s2 = inlined_call_operand.hbm [shape: bf16[128,128], index: 2, kind: input, shape index: {}]
  %s3 = inlined_call_operand.hbm [shape: bf16[128,128], index: 3, kind: output, shape index: {0}]
  %s4 = inlined_call_operand.hbm [shape: bf16[128,128], index: 4, kind: output, shape index: {1}]
  %5 = xla_tuple %s3, %s4
  %s6 = sld [smem:[#allocation0]]
  $region58: #{tpu_custom_call.1} parent=0
    _
  %s8 = ssub.s32 1, %s6
  %s9 = scalar_select 0, %s8, %s6
  $region1: #{tpu_custom_call.1} parent=0
    #allocation4 [shape = 'u8[32768]{0}', space=vmem, size = 0x8000, scoped, tag = 'input window, operand 0, single buffered']
    #allocation5 [shape = 's32[1]{0}', space=sflag, size = 0x4, scoped, tag = 'scoped memory for tpu_custom_call.1']
    #allocation6 [shape = 's32[1]{0}', space=sflag, size = 0x4, scoped, tag = 'scoped memory for tpu_custom_call.1']
    #allocation7 [shape = 'u8[32768]{0}', space=vmem, size = 0x8000, scoped, tag = 'input window, operand 1, single buffered']
    #allocation8 [shape = 's32[1]{0}', space=sflag, size = 0x4, scoped, tag = 'scoped memory for tpu_custom_call.1']
    #allocation9 [shape = 'u8[32768]{0}', space=vmem, size = 0x8000, scoped, tag = 'input window, operand 2, single buffered']
    #allocation10 [shape = 'u8[32768]{0}', space=vmem, size = 0x8000, scoped, tag = 'output window, operand 0, single buffered']
    #allocation11 [shape = 'u8[32768]{0}', space=vmem, size = 0x8000, scoped, tag = 'output window, operand 1, single buffered']
    #allocation12 [shape = 's32[1]{0}', space=sflag, size = 0x4, scoped, tag = 'scoped memory for tpu_custom_call.1']
    %10 = vsyncpa [#allocation5], 0
    %11 = vsyncpa [#allocation8], 0
    %12 = vsyncpa [#allocation6], 0
    %13 = vsyncpa [#allocation12], 0
    // Predicated region
    $region2: #{tpu_custom_call.1} parent=1 // pred_check
      _
    $region3: #{tpu_custom_call.1} parent=1 // pred_check_branch
      %15 = sbr.rel (0) target = $region5
    $region4: #{tpu_custom_call.1} parent=1 // pred_region
      %s17 = ssub.s32 1024, 1024
      %18 = vsyncadd [#allocation5], %s17
      %s19 = sshll.u32 [#allocation4], 4
      %s20 = int_to_ptr.vmem [resolvable:$true] %s19
      %25 = dma.hbm_to_vmem [thread:$0]  %s0, 1024, %s20, [#allocation5], 64, 64, 4
    $region5: #{tpu_custom_call.1} parent=1 // pred_fallthru
      _
    // Predicated region
    $region6: #{tpu_custom_call.1} parent=1 // pred_check
      _
    $region7: #{tpu_custom_call.1} parent=1 // pred_check_branch
      %27 = sbr.rel (0) target = $region9
    $region8: #{tpu_custom_call.1} parent=1 // pred_region
      %s29 = ssub.s32 1024, 1024
      %30 = vsyncadd [#allocation8], %s29
      %s31 = sshll.u32 [#allocation7], 4
      %s32 = int_to_ptr.vmem [resolvable:$true] %s31
      %37 = dma.hbm_to_vmem [thread:$0]  %s1, 1024, %s32, [#allocation8], 64, 64, 4
    $region9: #{tpu_custom_call.1} parent=1 // pred_fallthru
      _
    // Predicated region
    $region10: #{tpu_custom_call.1} parent=1 // pred_check
      _
    $region11: #{tpu_custom_call.1} parent=1 // pred_check_branch
      %39 = sbr.rel (0) target = $region13
    $region12: #{tpu_custom_call.1} parent=1 // pred_region
      %s41 = ssub.s32 1024, 1024
      %42 = vsyncadd [#allocation8], %s41
      %s43 = sshll.u32 [#allocation9], 4
      %s44 = int_to_ptr.vmem [resolvable:$true] %s43
      %49 = dma.hbm_to_vmem [thread:$0]  %s2, 1024, %s44, [#allocation8], 64, 64, 4
    $region13: #{tpu_custom_call.1} parent=1 // pred_fallthru
      _
    // Predicated region
    $region14: #{tpu_custom_call.1} parent=1 // pred_check
      _
    $region15: #{tpu_custom_call.1} parent=1 // pred_check_branch
      %51 = sbr.rel (0) target = $region17
    $region16: #{tpu_custom_call.1} parent=1 // pred_region
      %52 = dma.done [#allocation5], 1024
    $region17: #{tpu_custom_call.1} parent=1 // pred_fallthru
      _
    // Predicated region
    $region18: #{tpu_custom_call.1} parent=1 // pred_check
      _
    $region19: #{tpu_custom_call.1} parent=1 // pred_check_branch
      %54 = sbr.rel (0) target = $region21
    $region20: #{tpu_custom_call.1} parent=1 // pred_region
      %55 = dma.done [#allocation8], 1024
    $region21: #{tpu_custom_call.1} parent=1 // pred_fallthru
      _
    // Predicated region
    $region22: #{tpu_custom_call.1} parent=1 // pred_check
      _
    $region23: #{tpu_custom_call.1} parent=1 // pred_check_branch
      %57 = sbr.rel (0) target = $region25
    $region24: #{tpu_custom_call.1} parent=1 // pred_region
      %58 = dma.done [#allocation8], 1024
    $region25: #{tpu_custom_call.1} parent=1 // pred_fallthru
      _
    %p60 = scmp.eq.s32.totalorder 0, 0
    // Predicated region
    $region26: #{tpu_custom_call.1} parent=1 // pred_check
      %p61 = pneg %p60
    $region27: #{tpu_custom_call.1} parent=1 // pred_check_branch
      %63 = sbr.rel (%p61) target = $region29
    $region28: #{tpu_custom_call.1} parent=1 // pred_region
      %64 = vst [vmem:[#allocation2] sm:$0xff] 0.0
      %65 = vst [vmem:[#allocation2 + $0x8] sm:$0xff] 0.0
      %66 = vst [vmem:[#allocation2 + $0x10] sm:$0xff] 0.0
      %67 = vst [vmem:[#allocation2 + $0x18] sm:$0xff] 0.0
      %68 = vst [vmem:[#allocation2 + $0x20] sm:$0xff] 0.0
      %69 = vst [vmem:[#allocation2 + $0x28] sm:$0xff] 0.0
      %70 = vst [vmem:[#allocation2 + $0x30] sm:$0xff] 0.0
      %71 = vst [vmem:[#allocation2 + $0x38] sm:$0xff] 0.0
      %72 = vst [vmem:[#allocation2 + $0x40] sm:$0xff] 0.0
      %73 = vst [vmem:[#allocation2 + $0x48] sm:$0xff] 0.0
      %74 = vst [vmem:[#allocation2 + $0x50] sm:$0xff] 0.0
      %75 = vst [vmem:[#allocation2 + $0x58] sm:$0xff] 0.0
      %76 = vst [vmem:[#allocation2 + $0x60] sm:$0xff] 0.0
      %77 = vst [vmem:[#allocation2 + $0x68] sm:$0xff] 0.0
      %78 = vst [vmem:[#allocation2 + $0x70] sm:$0xff] 0.0
      %79 = vst [vmem:[#allocation2 + $0x78] sm:$0xff] 0.0
    $region29: #{tpu_custom_call.1} parent=1 // pred_fallthru
      _
    %p80 = scmp.eq.s32.totalorder 0, 0
    %p81 = pnand %p80, %p60
    %p82 = pneg %p81
    // Predicated region
    $region30: #{tpu_custom_call.1} parent=1 // pred_check
      _
    $region31: #{tpu_custom_call.1} parent=1 // pred_check_branch
      %84 = sbr.rel (%p81) target = $region33
    $region32: #{tpu_custom_call.1} parent=1 // pred_region
      %85 = vst [vmem:[#allocation3] sm:$0xff] 0.0
      %86 = vst [vmem:[#allocation3 + $0x8] sm:$0xff] 0.0
      %87 = vst [vmem:[#allocation3 + $0x10] sm:$0xff] 0.0
      %88 = vst [vmem:[#allocation3 + $0x18] sm:$0xff] 0.0
      %89 = vst [vmem:[#allocation3 + $0x20] sm:$0xff] 0.0
      %90 = vst [vmem:[#allocation3 + $0x28] sm:$0xff] 0.0
      %91 = vst [vmem:[#allocation3 + $0x30] sm:$0xff] 0.0
      %92 = vst [vmem:[#allocation3 + $0x38] sm:$0xff] 0.0
      %93 = vst [vmem:[#allocation3 + $0x40] sm:$0xff] 0.0
      %94 = vst [vmem:[#allocation3 + $0x48] sm:$0xff] 0.0
      %95 = vst [vmem:[#allocation3 + $0x50] sm:$0xff] 0.0
      %96 = vst [vmem:[#allocation3 + $0x58] sm:$0xff] 0.0
      %97 = vst [vmem:[#allocation3 + $0x60] sm:$0xff] 0.0
      %98 = vst [vmem:[#allocation3 + $0x68] sm:$0xff] 0.0
      %99 = vst [vmem:[#allocation3 + $0x70] sm:$0xff] 0.0
      %100 = vst [vmem:[#allocation3 + $0x78] sm:$0xff] 0.0
    $region33: #{tpu_custom_call.1} parent=1 // pred_fallthru
      _
    %v101 = vld [vmem:[#allocation4] sm:$0xf]
    %v102 = vld [vmem:[#allocation4 + $0x4] sm:$0xf]
    %v103 = vld [vmem:[#allocation4 + $0x8] sm:$0xf]
    %v104 = vld [vmem:[#allocation4 + $0xc] sm:$0xf]
    %v105 = vld [vmem:[#allocation4 + $0x10] sm:$0xf]
    %v106 = vld [vmem:[#allocation4 + $0x14] sm:$0xf]
    %v107 = vld [vmem:[#allocation4 + $0x18] sm:$0xf]
    %v108 = vld [vmem:[#allocation4 + $0x1c] sm:$0xf]
    %v109 = vld [vmem:[#allocation4 + $0x20] sm:$0xf]
    %v110 = vld [vmem:[#allocation4 + $0x24] sm:$0xf]
    %v111 = vld [vmem:[#allocation4 + $0x28] sm:$0xf]
    %v112 = vld [vmem:[#allocation4 + $0x2c] sm:$0xf]
    %v113 = vld [vmem:[#allocation4 + $0x30] sm:$0xf]
    %v114 = vld [vmem:[#allocation4 + $0x34] sm:$0xf]
    %v115 = vld [vmem:[#allocation4 + $0x38] sm:$0xf]
    %v116 = vld [vmem:[#allocation4 + $0x3c] sm:$0xf]
    %s117 = smul.u32 0, 128
    %v118 = vld [vmem:[#allocation2] sm:$0xff]
    %v119 = vld [vmem:[#allocation2 + $0x8] sm:$0xff]
    %v120 = vld [vmem:[#allocation2 + $0x10] sm:$0xff]
    %v121 = vld [vmem:[#allocation2 + $0x18] sm:$0xff]
    %v122 = vld [vmem:[#allocation2 + $0x20] sm:$0xff]
    %v123 = vld [vmem:[#allocation2 + $0x28] sm:$0xff]
    %v124 = vld [vmem:[#allocation2 + $0x30] sm:$0xff]
    %v125 = vld [vmem:[#allocation2 + $0x38] sm:$0xff]
    %v126 = vld [vmem:[#allocation2 + $0x40] sm:$0xff]
    %v127 = vld [vmem:[#allocation2 + $0x48] sm:$0xff]
    %v128 = vld [vmem:[#allocation2 + $0x50] sm:$0xff]
    %v129 = vld [vmem:[#allocation2 + $0x58] sm:$0xff]
    %v130 = vld [vmem:[#allocation2 + $0x60] sm:$0xff]
    %v131 = vld [vmem:[#allocation2 + $0x68] sm:$0xff]
    %v132 = vld [vmem:[#allocation2 + $0x70] sm:$0xff]
    %v133 = vld [vmem:[#allocation2 + $0x78] sm:$0xff]
    %s134 = sshra.s32 %s117, 3
    %s135 = sand.u32 %s117, 7
    %s136 = smul.addr %s134, 4
    %s137 = scalar_lea.vmem [#allocation7], %s136
    %v138 = vld [vmem:[%s137] sm:$0xf]
    %v139 = vld [vmem:[%s137 + $0x4] sm:$0xf]
    %v140 = vld [vmem:[%s137 + $0x8] sm:$0xf]
    %v141 = vld [vmem:[%s137 + $0xc] sm:$0xf]
    %v142 = vld [vmem:[%s137 + $0x10] sm:$0xf]
    %v143 = vld [vmem:[%s137 + $0x14] sm:$0xf]
    %v144 = vld [vmem:[%s137 + $0x18] sm:$0xf]
    %v145 = vld [vmem:[%s137 + $0x1c] sm:$0xf]
    %v146 = vld [vmem:[%s137 + $0x20] sm:$0xf]
    %v147 = vld [vmem:[%s137 + $0x24] sm:$0xf]
    %v148 = vld [vmem:[%s137 + $0x28] sm:$0xf]
    %v149 = vld [vmem:[%s137 + $0x2c] sm:$0xf]
    %v150 = vld [vmem:[%s137 + $0x30] sm:$0xf]
    %v151 = vld [vmem:[%s137 + $0x34] sm:$0xf]
    %v152 = vld [vmem:[%s137 + $0x38] sm:$0xf]
    %v153 = vld [vmem:[%s137 + $0x3c] sm:$0xf]
    %v170 = vunpack.c.l.b16 %v101
    %v171 = vunpack.c.l.b16 %v102
    %v172 = vunpack.c.l.b16 %v103
    %v173 = vunpack.c.l.b16 %v104
    %v174 = vunpack.c.l.b16 %v105
    %v175 = vunpack.c.l.b16 %v106
    %v176 = vunpack.c.l.b16 %v107
    %v177 = vunpack.c.l.b16 %v108
    %v178 = vunpack.c.l.b16 %v109
    %v179 = vunpack.c.l.b16 %v110
    %v180 = vunpack.c.l.b16 %v111
    %v181 = vunpack.c.l.b16 %v112
    %v182 = vunpack.c.l.b16 %v113
    %v183 = vunpack.c.l.b16 %v114
    %v184 = vunpack.c.l.b16 %v115
    %v185 = vunpack.c.l.b16 %v116
    %v186 = vpack.c.b16 %v171, %v170
    %v187 = vpack.c.b16 %v173, %v172
    %v188 = vpack.c.b16 %v175, %v174
    %v189 = vpack.c.b16 %v177, %v176
    %v190 = vpack.c.b16 %v179, %v178
    %v191 = vpack.c.b16 %v181, %v180
    %v192 = vpack.c.b16 %v183, %v182
    %v193 = vpack.c.b16 %v185, %v184
    %v218 = vunpack.c.l.b16 %v138
    %v219 = vunpack.c.l.b16 %v139
    %v220 = vunpack.c.l.b16 %v140
    %v221 = vunpack.c.l.b16 %v141
    %v222 = vunpack.c.l.b16 %v142
    %v223 = vunpack.c.l.b16 %v143
    %v224 = vunpack.c.l.b16 %v144
    %v225 = vunpack.c.l.b16 %v145
    %v226 = vunpack.c.l.b16 %v146
    %v227 = vunpack.c.l.b16 %v147
    %v228 = vunpack.c.l.b16 %v148
    %v229 = vunpack.c.l.b16 %v149
    %v230 = vunpack.c.l.b16 %v150
    %v231 = vunpack.c.l.b16 %v151
    %v232 = vunpack.c.l.b16 %v152
    %v233 = vunpack.c.l.b16 %v153
    %v234 = vpack.c.b16 %v219, %v218
    %v235 = vpack.c.b16 %v221, %v220
    %v236 = vpack.c.b16 %v223, %v222
    %v237 = vpack.c.b16 %v225, %v224
    %v238 = vpack.c.b16 %v227, %v226
    %v239 = vpack.c.b16 %v229, %v228
    %v240 = vpack.c.b16 %v231, %v230
    %v241 = vpack.c.b16 %v233, %v232
    %250 = vmatprep.subr.bf16.mxu0 0
    %251 = vmatpush1.bf16.msra.mxu0 %v241
    %252 = vmatprep.subr.bf16.mxu0 0
    %253 = vmatpush1.bf16.msra.mxu0 %v240
    %254 = vmatprep.subr.bf16.mxu0 0
    %255 = vmatpush1.bf16.msra.mxu0 %v239
    %256 = vmatprep.subr.bf16.mxu0 0
    %257 = vmatpush1.bf16.msra.mxu0 %v238
    %258 = vmatprep.subr.bf16.mxu0 0
    %259 = vmatpush1.bf16.msra.mxu0 %v237
    %260 = vmatprep.subr.bf16.mxu0 0
    %261 = vmatpush1.bf16.msra.mxu0 %v236
    %262 = vmatprep.subr.bf16.mxu0 0
    %263 = vmatpush1.bf16.msra.mxu0 %v235
    %264 = vmatprep.subr.bf16.mxu0 0
    %265 = vmatpush1.bf16.msra.mxu0 %v234
    %266 = vmatprep.subr.bf16.mxu0 0
    %267 = vmatpush2.bf16.msra.mxu0 0
    %268 = vmatprep.subr.bf16.mxu0 0
    %269 = vmatpush2.bf16.msra.mxu0 0
    %270 = vmatprep.subr.bf16.mxu0 0
    %271 = vmatpush2.bf16.msra.mxu0 0
    %272 = vmatprep.subr.bf16.mxu0 0
    %273 = vmatpush2.bf16.msra.mxu0 0
    %274 = vmatprep.subr.bf16.mxu0 0
    %275 = vmatpush2.bf16.msra.mxu0 0
    %276 = vmatprep.subr.bf16.mxu0 0
    %277 = vmatpush2.bf16.msra.mxu0 0
    %278 = vmatprep.subr.bf16.mxu0 0
    %279 = vmatpush2.bf16.msra.mxu0 0
    %280 = vmatprep.subr.bf16.mxu0 0
    %281 = vmatpush2.bf16.msra.mxu0 0
    %282 = vmatprep.mubr.bf16.mxu0 0
    %283 = vmatmul.mubr.bf16.gmra.mxu0 %v186
    %v284 = vpop.f32.mrf.mxu0
    %v285 = vadd.f32 0.0, %v284
    %v286 = vpop.f32.mrf.mxu0
    %v287 = vpop.f32.mrf.mxu0
    %v288 = vadd.f32 0.0, %v287
    %v289 = vpop.f32.mrf.mxu0
    %290 = vmatprep.mubr.bf16.mxu0 0
    %291 = vmatmul.mubr.bf16.gmra.mxu0 %v187
    %v292 = vpop.f32.mrf.mxu0
    %v293 = vadd.f32 0.0, %v292
    %v294 = vpop.f32.mrf.mxu0
    %v295 = vpop.f32.mrf.mxu0
    %v296 = vadd.f32 0.0, %v295
    %v297 = vpop.f32.mrf.mxu0
    %298 = vmatprep.mubr.bf16.mxu0 0
    %299 = vmatmul.mubr.bf16.gmra.mxu0 %v188
    %v300 = vpop.f32.mrf.mxu0
    %v301 = vadd.f32 0.0, %v300
    %v302 = vpop.f32.mrf.mxu0
    %v303 = vpop.f32.mrf.mxu0
    %v304 = vadd.f32 0.0, %v303
    %v305 = vpop.f32.mrf.mxu0
    %306 = vmatprep.mubr.bf16.mxu0 0
    %307 = vmatmul.mubr.bf16.gmra.mxu0 %v189
    %v308 = vpop.f32.mrf.mxu0
    %v309 = vadd.f32 0.0, %v308
    %v310 = vpop.f32.mrf.mxu0
    %v311 = vpop.f32.mrf.mxu0
    %v312 = vadd.f32 0.0, %v311
    %v313 = vpop.f32.mrf.mxu0
    %314 = vmatprep.mubr.bf16.mxu0 0
    %315 = vmatmul.mubr.bf16.gmra.mxu0 %v190
    %v316 = vpop.f32.mrf.mxu0
    %v317 = vadd.f32 0.0, %v316
    %v318 = vpop.f32.mrf.mxu0
    %v319 = vpop.f32.mrf.mxu0
    %v320 = vadd.f32 0.0, %v319
    %v321 = vpop.f32.mrf.mxu0
    %322 = vmatprep.mubr.bf16.mxu0 0
    %323 = vmatmul.mubr.bf16.gmra.mxu0 %v191
    %v324 = vpop.f32.mrf.mxu0
    %v325 = vadd.f32 0.0, %v324
    %v326 = vpop.f32.mrf.mxu0
    %v327 = vpop.f32.mrf.mxu0
    %v328 = vadd.f32 0.0, %v327
    %v329 = vpop.f32.mrf.mxu0
    %330 = vmatprep.mubr.bf16.mxu0 0
    %331 = vmatmul.mubr.bf16.gmra.mxu0 %v192
    %v332 = vpop.f32.mrf.mxu0
    %v333 = vadd.f32 0.0, %v332
    %v334 = vpop.f32.mrf.mxu0
    %v335 = vpop.f32.mrf.mxu0
    %v336 = vadd.f32 0.0, %v335
    %v337 = vpop.f32.mrf.mxu0
    %338 = vmatprep.mubr.bf16.mxu0 0
    %339 = vmatmul.mubr.bf16.gmra.mxu0 %v193
    %v340 = vpop.f32.mrf.mxu0
    %v341 = vadd.f32 0.0, %v340
    %v342 = vpop.f32.mrf.mxu0
    %v343 = vpop.f32.mrf.mxu0
    %v344 = vadd.f32 0.0, %v343
    %v345 = vpop.f32.mrf.mxu0
    %346 = vdwg.mxu0
    %v347 = vadd.f32 %v118, %v285
    %v348 = vadd.f32 %v119, %v288
    %v349 = vadd.f32 %v120, %v293
    %v350 = vadd.f32 %v121, %v296
    %v351 = vadd.f32 %v122, %v301
    %v352 = vadd.f32 %v123, %v304
    %v353 = vadd.f32 %v124, %v309
    %v354 = vadd.f32 %v125, %v312
    %v355 = vadd.f32 %v126, %v317
    %v356 = vadd.f32 %v127, %v320
    %v357 = vadd.f32 %v128, %v325
    %v358 = vadd.f32 %v129, %v328
    %v359 = vadd.f32 %v130, %v333
    %v360 = vadd.f32 %v131, %v336
    %v361 = vadd.f32 %v132, %v341
    %v362 = vadd.f32 %v133, %v344
    %363 = vst [vmem:[#allocation2] sm:$0xff] %v347
    %364 = vst [vmem:[#allocation2 + $0x8] sm:$0xff] %v348
    %365 = vst [vmem:[#allocation2 + $0x10] sm:$0xff] %v349
    %366 = vst [vmem:[#allocation2 + $0x18] sm:$0xff] %v350
    %367 = vst [vmem:[#allocation2 + $0x20] sm:$0xff] %v351
    %368 = vst [vmem:[#allocation2 + $0x28] sm:$0xff] %v352
    %369 = vst [vmem:[#allocation2 + $0x30] sm:$0xff] %v353
    %370 = vst [vmem:[#allocation2 + $0x38] sm:$0xff] %v354
    %371 = vst [vmem:[#allocation2 + $0x40] sm:$0xff] %v355
    %372 = vst [vmem:[#allocation2 + $0x48] sm:$0xff] %v356
    %373 = vst [vmem:[#allocation2 + $0x50] sm:$0xff] %v357
    %374 = vst [vmem:[#allocation2 + $0x58] sm:$0xff] %v358
    %375 = vst [vmem:[#allocation2 + $0x60] sm:$0xff] %v359
    %376 = vst [vmem:[#allocation2 + $0x68] sm:$0xff] %v360
    %377 = vst [vmem:[#allocation2 + $0x70] sm:$0xff] %v361
    %378 = vst [vmem:[#allocation2 + $0x78] sm:$0xff] %v362
    %v379 = vld [vmem:[#allocation9] sm:$0xf]
    %v380 = vld [vmem:[#allocation9 + $0x4] sm:$0xf]
    %v381 = vld [vmem:[#allocation9 + $0x8] sm:$0xf]
    %v382 = vld [vmem:[#allocation9 + $0xc] sm:$0xf]
    %v383 = vld [vmem:[#allocation9 + $0x10] sm:$0xf]
    %v384 = vld [vmem:[#allocation9 + $0x14] sm:$0xf]
    %v385 = vld [vmem:[#allocation9 + $0x18] sm:$0xf]
    %v386 = vld [vmem:[#allocation9 + $0x1c] sm:$0xf]
    %v387 = vld [vmem:[#allocation9 + $0x20] sm:$0xf]
    %v388 = vld [vmem:[#allocation9 + $0x24] sm:$0xf]
    %v389 = vld [vmem:[#allocation9 + $0x28] sm:$0xf]
    %v390 = vld [vmem:[#allocation9 + $0x2c] sm:$0xf]
    %v391 = vld [vmem:[#allocation9 + $0x30] sm:$0xf]
    %v392 = vld [vmem:[#allocation9 + $0x34] sm:$0xf]
    %v393 = vld [vmem:[#allocation9 + $0x38] sm:$0xf]
    %v394 = vld [vmem:[#allocation9 + $0x3c] sm:$0xf]
    %395 = vxpose.xlu0.c.b16.start [1/8] %v186, 128
    %396 = vxpose.xlu0.c.b16.cont [2/8] %v187, 128
    %397 = vxpose.xlu0.c.b16.cont [3/8] %v188, 128
    %398 = vxpose.xlu0.c.b16.cont [4/8] %v189, 128
    %399 = vxpose.xlu0.c.b16.cont [5/8] %v190, 128
    %400 = vxpose.xlu0.c.b16.cont [6/8] %v191, 128
    %401 = vxpose.xlu0.c.b16.cont [7/8] %v192, 128
    %402 = vxpose.xlu0.c.b16.end [8/8] %v193, 128
    %v403 = vpop.trf.xlu0
    %v404 = vpop.trf.xlu0
    %v405 = vpop.trf.xlu0
    %v406 = vpop.trf.xlu0
    %v407 = vpop.trf.xlu0
    %v408 = vpop.trf.xlu0
    %v409 = vpop.trf.xlu0
    %v410 = vpop.trf.xlu0
    %v427 = vunpack.c.l.b16 %v379
    %v428 = vunpack.c.l.b16 %v380
    %v429 = vunpack.c.l.b16 %v381
    %v430 = vunpack.c.l.b16 %v382
    %v431 = vunpack.c.l.b16 %v383
    %v432 = vunpack.c.l.b16 %v384
    %v433 = vunpack.c.l.b16 %v385
    %v434 = vunpack.c.l.b16 %v386
    %v435 = vunpack.c.l.b16 %v387
    %v436 = vunpack.c.l.b16 %v388
    %v437 = vunpack.c.l.b16 %v389
    %v438 = vunpack.c.l.b16 %v390
    %v439 = vunpack.c.l.b16 %v391
    %v440 = vunpack.c.l.b16 %v392
    %v441 = vunpack.c.l.b16 %v393
    %v442 = vunpack.c.l.b16 %v394
    %v443 = vpack.c.b16 %v428, %v427
    %v444 = vpack.c.b16 %v430, %v429
    %v445 = vpack.c.b16 %v432, %v431
    %v446 = vpack.c.b16 %v434, %v433
    %v447 = vpack.c.b16 %v436, %v435
    %v448 = vpack.c.b16 %v438, %v437
    %v449 = vpack.c.b16 %v440, %v439
    %v450 = vpack.c.b16 %v442, %v441
    %459 = vmatprep.subr.bf16.mxu0 0
    %460 = vmatpush1.bf16.msra.mxu0 %v450
    %461 = vmatprep.subr.bf16.mxu0 0
    %462 = vmatpush1.bf16.msra.mxu0 %v449
    %463 = vmatprep.subr.bf16.mxu0 0
    %464 = vmatpush1.bf16.msra.mxu0 %v448
    %465 = vmatprep.subr.bf16.mxu0 0
    %466 = vmatpush1.bf16.msra.mxu0 %v447
    %467 = vmatprep.subr.bf16.mxu0 0
    %468 = vmatpush1.bf16.msra.mxu0 %v446
    %469 = vmatprep.subr.bf16.mxu0 0
    %470 = vmatpush1.bf16.msra.mxu0 %v445
    %471 = vmatprep.subr.bf16.mxu0 0
    %472 = vmatpush1.bf16.msra.mxu0 %v444
    %473 = vmatprep.subr.bf16.mxu0 0
    %474 = vmatpush1.bf16.msra.mxu0 %v443
    %475 = vmatprep.subr.bf16.mxu0 0
    %476 = vmatpush2.bf16.msra.mxu0 0
    %477 = vmatprep.subr.bf16.mxu0 0
    %478 = vmatpush2.bf16.msra.mxu0 0
    %479 = vmatprep.subr.bf16.mxu0 0
    %480 = vmatpush2.bf16.msra.mxu0 0
    %481 = vmatprep.subr.bf16.mxu0 0
    %482 = vmatpush2.bf16.msra.mxu0 0
    %483 = vmatprep.subr.bf16.mxu0 0
    %484 = vmatpush2.bf16.msra.mxu0 0
    %485 = vmatprep.subr.bf16.mxu0 0
    %486 = vmatpush2.bf16.msra.mxu0 0
    %487 = vmatprep.subr.bf16.mxu0 0
    %488 = vmatpush2.bf16.msra.mxu0 0
    %489 = vmatprep.subr.bf16.mxu0 0
    %490 = vmatpush2.bf16.msra.mxu0 0
    %491 = vmatprep.mubr.bf16.mxu0 0
    %492 = vmatmul.mubr.bf16.gmra.mxu0 %v403
    %v493 = vpop.f32.mrf.mxu0
    %v494 = vadd.f32 0.0, %v493
    %v495 = vpop.f32.mrf.mxu0
    %v496 = vpop.f32.mrf.mxu0
    %v497 = vadd.f32 0.0, %v496
    %v498 = vpop.f32.mrf.mxu0
    %499 = vmatprep.mubr.bf16.mxu0 0
    %500 = vmatmul.mubr.bf16.gmra.mxu0 %v404
    %v501 = vpop.f32.mrf.mxu0
    %v502 = vadd.f32 0.0, %v501
    %v503 = vpop.f32.mrf.mxu0
    %v504 = vpop.f32.mrf.mxu0
    %v505 = vadd.f32 0.0, %v504
    %v506 = vpop.f32.mrf.mxu0
    %507 = vmatprep.mubr.bf16.mxu0 0
    %508 = vmatmul.mubr.bf16.gmra.mxu0 %v405
    %v509 = vpop.f32.mrf.mxu0
    %v510 = vadd.f32 0.0, %v509
    %v511 = vpop.f32.mrf.mxu0
    %v512 = vpop.f32.mrf.mxu0
    %v513 = vadd.f32 0.0, %v512
    %v514 = vpop.f32.mrf.mxu0
    %515 = vmatprep.mubr.bf16.mxu0 0
    %516 = vmatmul.mubr.bf16.gmra.mxu0 %v406
    %v517 = vpop.f32.mrf.mxu0
    %v518 = vadd.f32 0.0, %v517
    %v519 = vpop.f32.mrf.mxu0
    %v520 = vpop.f32.mrf.mxu0
    %v521 = vadd.f32 0.0, %v520
    %v522 = vpop.f32.mrf.mxu0
    %523 = vmatprep.mubr.bf16.mxu0 0
    %524 = vmatmul.mubr.bf16.gmra.mxu0 %v407
    %v525 = vpop.f32.mrf.mxu0
    %v526 = vadd.f32 0.0, %v525
    %v527 = vpop.f32.mrf.mxu0
    %v528 = vpop.f32.mrf.mxu0
    %v529 = vadd.f32 0.0, %v528
    %v530 = vpop.f32.mrf.mxu0
    %531 = vmatprep.mubr.bf16.mxu0 0
    %532 = vmatmul.mubr.bf16.gmra.mxu0 %v408
    %v533 = vpop.f32.mrf.mxu0
    %v534 = vadd.f32 0.0, %v533
    %v535 = vpop.f32.mrf.mxu0
    %v536 = vpop.f32.mrf.mxu0
    %v537 = vadd.f32 0.0, %v536
    %v538 = vpop.f32.mrf.mxu0
    %539 = vmatprep.mubr.bf16.mxu0 0
    %540 = vmatmul.mubr.bf16.gmra.mxu0 %v409
    %v541 = vpop.f32.mrf.mxu0
    %v542 = vadd.f32 0.0, %v541
    %v543 = vpop.f32.mrf.mxu0
    %v544 = vpop.f32.mrf.mxu0
    %v545 = vadd.f32 0.0, %v544
    %v546 = vpop.f32.mrf.mxu0
    %547 = vmatprep.mubr.bf16.mxu0 0
    %548 = vmatmul.mubr.bf16.gmra.mxu0 %v410
    %v549 = vpop.f32.mrf.mxu0
    %v550 = vadd.f32 0.0, %v549
    %v551 = vpop.f32.mrf.mxu0
    %v552 = vpop.f32.mrf.mxu0
    %v553 = vadd.f32 0.0, %v552
    %v554 = vpop.f32.mrf.mxu0
    %555 = vdwg.mxu0
    %s556 = scalar_lea.vmem [#allocation3], %s117
    %v557 = vld [vmem:[%s556] sm:$0xff]
    %v558 = vld [vmem:[%s556 + $0x8] sm:$0xff]
    %v559 = vld [vmem:[%s556 + $0x10] sm:$0xff]
    %v560 = vld [vmem:[%s556 + $0x18] sm:$0xff]
    %v561 = vld [vmem:[%s556 + $0x20] sm:$0xff]
    %v562 = vld [vmem:[%s556 + $0x28] sm:$0xff]
    %v563 = vld [vmem:[%s556 + $0x30] sm:$0xff]
    %v564 = vld [vmem:[%s556 + $0x38] sm:$0xff]
    %v565 = vld [vmem:[%s556 + $0x40] sm:$0xff]
    %v566 = vld [vmem:[%s556 + $0x48] sm:$0xff]
    %v567 = vld [vmem:[%s556 + $0x50] sm:$0xff]
    %v568 = vld [vmem:[%s556 + $0x58] sm:$0xff]
    %v569 = vld [vmem:[%s556 + $0x60] sm:$0xff]
    %v570 = vld [vmem:[%s556 + $0x68] sm:$0xff]
    %v571 = vld [vmem:[%s556 + $0x70] sm:$0xff]
    %v572 = vld [vmem:[%s556 + $0x78] sm:$0xff]
    %v573 = vadd.f32 %v557, %v494
    %v574 = vadd.f32 %v558, %v497
    %v575 = vadd.f32 %v559, %v502
    %v576 = vadd.f32 %v560, %v505
    %v577 = vadd.f32 %v561, %v510
    %v578 = vadd.f32 %v562, %v513
    %v579 = vadd.f32 %v563, %v518
    %v580 = vadd.f32 %v564, %v521
    %v581 = vadd.f32 %v565, %v526
    %v582 = vadd.f32 %v566, %v529
    %v583 = vadd.f32 %v567, %v534
    %v584 = vadd.f32 %v568, %v537
    %v585 = vadd.f32 %v569, %v542
    %v586 = vadd.f32 %v570, %v545
    %v587 = vadd.f32 %v571, %v550
    %v588 = vadd.f32 %v572, %v553
    %589 = vst [vmem:[%s556] sm:$0xff] %v573
    %590 = vst [vmem:[%s556 + $0x8] sm:$0xff] %v574
    %591 = vst [vmem:[%s556 + $0x10] sm:$0xff] %v575
    %592 = vst [vmem:[%s556 + $0x18] sm:$0xff] %v576
    %593 = vst [vmem:[%s556 + $0x20] sm:$0xff] %v577
    %594 = vst [vmem:[%s556 + $0x28] sm:$0xff] %v578
    %595 = vst [vmem:[%s556 + $0x30] sm:$0xff] %v579
    %596 = vst [vmem:[%s556 + $0x38] sm:$0xff] %v580
    %597 = vst [vmem:[%s556 + $0x40] sm:$0xff] %v581
    %598 = vst [vmem:[%s556 + $0x48] sm:$0xff] %v582
    %599 = vst [vmem:[%s556 + $0x50] sm:$0xff] %v583
    %600 = vst [vmem:[%s556 + $0x58] sm:$0xff] %v584
    %601 = vst [vmem:[%s556 + $0x60] sm:$0xff] %v585
    %602 = vst [vmem:[%s556 + $0x68] sm:$0xff] %v586
    %603 = vst [vmem:[%s556 + $0x70] sm:$0xff] %v587
    %604 = vst [vmem:[%s556 + $0x78] sm:$0xff] %v588
    // Predicated region
    $region34: #{tpu_custom_call.1} parent=1 // pred_check
      %p605 = pneg %p60
    $region35: #{tpu_custom_call.1} parent=1 // pred_check_branch
      %607 = sbr.rel (%p605) target = $region37
    $region36: #{tpu_custom_call.1} parent=1 // pred_region
      %v608 = vld [vmem:[#allocation2] sm:$0xff]
      %v609 = vld [vmem:[#allocation2 + $0x8] sm:$0xff]
      %v610 = vld [vmem:[#allocation2 + $0x10] sm:$0xff]
      %v611 = vld [vmem:[#allocation2 + $0x18] sm:$0xff]
      %v612 = vld [vmem:[#allocation2 + $0x20] sm:$0xff]
      %v613 = vld [vmem:[#allocation2 + $0x28] sm:$0xff]
      %v614 = vld [vmem:[#allocation2 + $0x30] sm:$0xff]
      %v615 = vld [vmem:[#allocation2 + $0x38] sm:$0xff]
      %v616 = vld [vmem:[#allocation2 + $0x40] sm:$0xff]
      %v617 = vld [vmem:[#allocation2 + $0x48] sm:$0xff]
      %v618 = vld [vmem:[#allocation2 + $0x50] sm:$0xff]
      %v619 = vld [vmem:[#allocation2 + $0x58] sm:$0xff]
      %v620 = vld [vmem:[#allocation2 + $0x60] sm:$0xff]
      %v621 = vld [vmem:[#allocation2 + $0x68] sm:$0xff]
      %v622 = vld [vmem:[#allocation2 + $0x70] sm:$0xff]
      %v623 = vld [vmem:[#allocation2 + $0x78] sm:$0xff]
      %v624 = vpack.c.bf16 %v609, %v608
      %v625 = vpack.c.bf16 %v611, %v610
      %v626 = vpack.c.bf16 %v613, %v612
      %v627 = vpack.c.bf16 %v615, %v614
      %v628 = vpack.c.bf16 %v617, %v616
      %v629 = vpack.c.bf16 %v619, %v618
      %v630 = vpack.c.bf16 %v621, %v620
      %v631 = vpack.c.bf16 %v623, %v622
      %v640 = vunpack.c.l.b16 %v624
      %v641 = vunpack.c.h.b16 %v624
      %v642 = vunpack.c.l.b16 %v625
      %v643 = vunpack.c.h.b16 %v625
      %v644 = vunpack.c.l.b16 %v626
      %v645 = vunpack.c.h.b16 %v626
      %v646 = vunpack.c.l.b16 %v627
      %v647 = vunpack.c.h.b16 %v627
      %v648 = vunpack.c.l.b16 %v628
      %v649 = vunpack.c.h.b16 %v628
      %v650 = vunpack.c.l.b16 %v629
      %v651 = vunpack.c.h.b16 %v629
      %v652 = vunpack.c.l.b16 %v630
      %v653 = vunpack.c.h.b16 %v630
      %v654 = vunpack.c.l.b16 %v631
      %v655 = vunpack.c.h.b16 %v631
      %v656 = vpack.c.b16 %v640, %v640
      %v657 = vpack.c.b16 %v641, %v641
      %v658 = vpack.c.b16 %v642, %v642
      %v659 = vpack.c.b16 %v643, %v643
      %v660 = vpack.c.b16 %v644, %v644
      %v661 = vpack.c.b16 %v645, %v645
      %v662 = vpack.c.b16 %v646, %v646
      %v663 = vpack.c.b16 %v647, %v647
      %v664 = vpack.c.b16 %v648, %v648
      %v665 = vpack.c.b16 %v649, %v649
      %v666 = vpack.c.b16 %v650, %v650
      %v667 = vpack.c.b16 %v651, %v651
      %v668 = vpack.c.b16 %v652, %v652
      %v669 = vpack.c.b16 %v653, %v653
      %v670 = vpack.c.b16 %v654, %v654
      %v671 = vpack.c.b16 %v655, %v655
      %688 = vst [vmem:[#allocation10] sm:$0xf] %v656
      %689 = vst [vmem:[#allocation10 + $0x4] sm:$0xf] %v657
      %690 = vst [vmem:[#allocation10 + $0x8] sm:$0xf] %v658
      %691 = vst [vmem:[#allocation10 + $0xc] sm:$0xf] %v659
      %692 = vst [vmem:[#allocation10 + $0x10] sm:$0xf] %v660
      %693 = vst [vmem:[#allocation10 + $0x14] sm:$0xf] %v661
      %694 = vst [vmem:[#allocation10 + $0x18] sm:$0xf] %v662
      %695 = vst [vmem:[#allocation10 + $0x1c] sm:$0xf] %v663
      %696 = vst [vmem:[#allocation10 + $0x20] sm:$0xf] %v664
      %697 = vst [vmem:[#allocation10 + $0x24] sm:$0xf] %v665
      %698 = vst [vmem:[#allocation10 + $0x28] sm:$0xf] %v666
      %699 = vst [vmem:[#allocation10 + $0x2c] sm:$0xf] %v667
      %700 = vst [vmem:[#allocation10 + $0x30] sm:$0xf] %v668
      %701 = vst [vmem:[#allocation10 + $0x34] sm:$0xf] %v669
      %702 = vst [vmem:[#allocation10 + $0x38] sm:$0xf] %v670
      %703 = vst [vmem:[#allocation10 + $0x3c] sm:$0xf] %v671
    $region37: #{tpu_custom_call.1} parent=1 // pred_fallthru
      _
    // Predicated region
    $region38: #{tpu_custom_call.1} parent=1 // pred_check
      _
    $region39: #{tpu_custom_call.1} parent=1 // pred_check_branch
      %705 = sbr.rel (%p81) target = $region41
    $region40: #{tpu_custom_call.1} parent=1 // pred_region
      %v706 = vld [vmem:[#allocation3] sm:$0xff]
      %v707 = vld [vmem:[#allocation3 + $0x8] sm:$0xff]
      %v708 = vld [vmem:[#allocation3 + $0x10] sm:$0xff]
      %v709 = vld [vmem:[#allocation3 + $0x18] sm:$0xff]
      %v710 = vld [vmem:[#allocation3 + $0x20] sm:$0xff]
      %v711 = vld [vmem:[#allocation3 + $0x28] sm:$0xff]
      %v712 = vld [vmem:[#allocation3 + $0x30] sm:$0xff]
      %v713 = vld [vmem:[#allocation3 + $0x38] sm:$0xff]
      %v714 = vld [vmem:[#allocation3 + $0x40] sm:$0xff]
      %v715 = vld [vmem:[#allocation3 + $0x48] sm:$0xff]
      %v716 = vld [vmem:[#allocation3 + $0x50] sm:$0xff]
      %v717 = vld [vmem:[#allocation3 + $0x58] sm:$0xff]
      %v718 = vld [vmem:[#allocation3 + $0x60] sm:$0xff]
      %v719 = vld [vmem:[#allocation3 + $0x68] sm:$0xff]
      %v720 = vld [vmem:[#allocation3 + $0x70] sm:$0xff]
      %v721 = vld [vmem:[#allocation3 + $0x78] sm:$0xff]
      %v722 = vpack.c.bf16 %v707, %v706
      %v723 = vpack.c.bf16 %v709, %v708
      %v724 = vpack.c.bf16 %v711, %v710
      %v725 = vpack.c.bf16 %v713, %v712
      %v726 = vpack.c.bf16 %v715, %v714
      %v727 = vpack.c.bf16 %v717, %v716
      %v728 = vpack.c.bf16 %v719, %v718
      %v729 = vpack.c.bf16 %v721, %v720
      %v738 = vunpack.c.l.b16 %v722
      %v739 = vunpack.c.h.b16 %v722
      %v740 = vunpack.c.l.b16 %v723
      %v741 = vunpack.c.h.b16 %v723
      %v742 = vunpack.c.l.b16 %v724
      %v743 = vunpack.c.h.b16 %v724
      %v744 = vunpack.c.l.b16 %v725
      %v745 = vunpack.c.h.b16 %v725
      %v746 = vunpack.c.l.b16 %v726
      %v747 = vunpack.c.h.b16 %v726
      %v748 = vunpack.c.l.b16 %v727
      %v749 = vunpack.c.h.b16 %v727
      %v750 = vunpack.c.l.b16 %v728
      %v751 = vunpack.c.h.b16 %v728
      %v752 = vunpack.c.l.b16 %v729
      %v753 = vunpack.c.h.b16 %v729
      %v754 = vpack.c.b16 %v738, %v738
      %v755 = vpack.c.b16 %v739, %v739
      %v756 = vpack.c.b16 %v740, %v740
      %v757 = vpack.c.b16 %v741, %v741
      %v758 = vpack.c.b16 %v742, %v742
      %v759 = vpack.c.b16 %v743, %v743
      %v760 = vpack.c.b16 %v744, %v744
      %v761 = vpack.c.b16 %v745, %v745
      %v762 = vpack.c.b16 %v746, %v746
      %v763 = vpack.c.b16 %v747, %v747
      %v764 = vpack.c.b16 %v748, %v748
      %v765 = vpack.c.b16 %v749, %v749
      %v766 = vpack.c.b16 %v750, %v750
      %v767 = vpack.c.b16 %v751, %v751
      %v768 = vpack.c.b16 %v752, %v752
      %v769 = vpack.c.b16 %v753, %v753
      %786 = vst [vmem:[#allocation11] sm:$0xf] %v754
      %787 = vst [vmem:[#allocation11 + $0x4] sm:$0xf] %v755
      %788 = vst [vmem:[#allocation11 + $0x8] sm:$0xf] %v756
      %789 = vst [vmem:[#allocation11 + $0xc] sm:$0xf] %v757
      %790 = vst [vmem:[#allocation11 + $0x10] sm:$0xf] %v758
      %791 = vst [vmem:[#allocation11 + $0x14] sm:$0xf] %v759
      %792 = vst [vmem:[#allocation11 + $0x18] sm:$0xf] %v760
      %793 = vst [vmem:[#allocation11 + $0x1c] sm:$0xf] %v761
      %794 = vst [vmem:[#allocation11 + $0x20] sm:$0xf] %v762
      %795 = vst [vmem:[#allocation11 + $0x24] sm:$0xf] %v763
      %796 = vst [vmem:[#allocation11 + $0x28] sm:$0xf] %v764
      %797 = vst [vmem:[#allocation11 + $0x2c] sm:$0xf] %v765
      %798 = vst [vmem:[#allocation11 + $0x30] sm:$0xf] %v766
      %799 = vst [vmem:[#allocation11 + $0x34] sm:$0xf] %v767
      %800 = vst [vmem:[#allocation11 + $0x38] sm:$0xf] %v768
      %801 = vst [vmem:[#allocation11 + $0x3c] sm:$0xf] %v769
    $region41: #{tpu_custom_call.1} parent=1 // pred_fallthru
      _
    // Predicated region
    $region42: #{tpu_custom_call.1} parent=1 // pred_check
      _
    $region43: #{tpu_custom_call.1} parent=1 // pred_check_branch
      %803 = sbr.rel (0) target = $region45
    $region44: #{tpu_custom_call.1} parent=1 // pred_region
      %s805 = ssub.s32 1024, 1024
      %806 = vsyncadd [#allocation6], %s805
      %s807 = sshll.u32 [#allocation10], 4
      %s808 = int_to_ptr.vmem [resolvable:$true] %s807
      %813 = dma.vmem_to_hbm [thread:$0]  %s808, 1024, %s3, [#allocation6], 64, 64, 4
    $region45: #{tpu_custom_call.1} parent=1 // pred_fallthru
      _
    // Predicated region
    $region46: #{tpu_custom_call.1} parent=1 // pred_check
      _
    $region47: #{tpu_custom_call.1} parent=1 // pred_check_branch
      %815 = sbr.rel (0) target = $region49
    $region48: #{tpu_custom_call.1} parent=1 // pred_region
      %s817 = ssub.s32 1024, 1024
      %818 = vsyncadd [#allocation12], %s817
      %s819 = sshll.u32 [#allocation11], 4
      %s820 = int_to_ptr.vmem [resolvable:$true] %s819
      %825 = dma.vmem_to_hbm [thread:$0]  %s820, 1024, %s4, [#allocation12], 64, 64, 4
    $region49: #{tpu_custom_call.1} parent=1 // pred_fallthru
      _
    // Predicated region
    $region50: #{tpu_custom_call.1} parent=1 // pred_check
      _
    $region51: #{tpu_custom_call.1} parent=1 // pred_check_branch
      %827 = sbr.rel (0) target = $region53
    $region52: #{tpu_custom_call.1} parent=1 // pred_region
      %828 = dma.done [#allocation6], 1024
    $region53: #{tpu_custom_call.1} parent=1 // pred_fallthru
      _
    // Predicated region
    $region54: #{tpu_custom_call.1} parent=1 // pred_check
      _
    $region55: #{tpu_custom_call.1} parent=1 // pred_check_branch
      %830 = sbr.rel (0) target = $region57
    $region56: #{tpu_custom_call.1} parent=1 // pred_region
      %831 = dma.done [#allocation12], 1024
    $region57: #{tpu_custom_call.1} parent=1 // pred_fallthru
      _
    %832 = vsyncpa [#allocation5], 1
    %833 = vsyncpa [#allocation8], 1
    %834 = vsyncpa [#allocation6], 1
    %835 = vsyncpa [#allocation12], 1

</llo_original>
